<compile_context>
chip_gen: v5e
topology: v5e:2x2
jax: 0.10.0
libtpu: 0.0.40
codegen_flags: <defaults>
</compile_context>

<pallas_src>
import functools

import jax
import jax.numpy as jnp
from jax import lax
from jax.experimental import pallas as pl
from jax.experimental.pallas import tpu as pltpu


def _conv3x3_banded(x2d, bw_ref):
    """3x3 SAME conv in lane-flattened layout.

    x2d:    (H, W*Cin) float32 activations, channels folded into the lane dim.
    bw_ref: (3, W*Cin, W*Cout) bfloat16 banded weights; bw_ref[kh] folds the kw
            taps, the Cin contraction and the zero padding along W of kernel
            row kh into a single matrix.
    Returns (H, W*Cout) float32.
    """
    H, L = x2d.shape
    zrow = jnp.zeros((1, L), x2d.dtype)
    xp = jnp.concatenate([zrow, x2d, zrow], axis=0)   # zero pad along H only
    acc = jnp.dot(xp[0:H].astype(jnp.bfloat16), bw_ref[0],
                  preferred_element_type=jnp.float32)
    acc = acc + jnp.dot(xp[1:H + 1].astype(jnp.bfloat16), bw_ref[1],
                        preferred_element_type=jnp.float32)
    acc = acc + jnp.dot(xp[2:H + 2].astype(jnp.bfloat16), bw_ref[2],
                        preferred_element_type=jnp.float32)
    return acc


def _double_conv_kernel(x_ref, bw1_ref, bw2_ref, s1_ref, b1_ref, s2_ref, b2_ref,
                        o_ref):
    # x_ref: (1, H, W*Cin) f32, o_ref: (1, H, W*Cout) f32 -- both lane-dense.
    # s/b refs: (1, W*C) folded BN scale / bias, pre-tiled across W (f32).
    x2d = x_ref[0]

    # conv1 -> BN1 (folded) -> ReLU   (epilogue stays f32)
    y1 = _conv3x3_banded(x2d, bw1_ref)
    y1 = jnp.maximum(y1 * s1_ref[...] + b1_ref[...], 0.0)

    # conv2 -> BN2 (folded) -> ReLU
    y2 = _conv3x3_banded(y1, bw2_ref)
    y2 = jnp.maximum(y2 * s2_ref[...] + b2_ref[...], 0.0)

    # Single dense store: minor dim is W*Cout (== 128 for this config).
    o_ref[0] = y2.astype(o_ref.dtype)


def _banded_conv3x3_weights(w_oihw, W, dtype=jnp.bfloat16):
    """Build the 3 banded matrices of a 3x3 SAME conv for the (H, W*C) layout.

    B[kh][wi*Cin + ci, wo*Cout + co] = w[co, ci, kh, wi-wo+1]  if |wi-wo| <= 1
                                       0                       otherwise
    so that  y[h, wo*Cout+co] = sum_kh (x_shifted_by_(kh-1) @ B[kh])[h, ...].
    """
    _Cout, _Cin, _, _ = w_oihw.shape
    wt = jnp.transpose(w_oihw, (2, 3, 1, 0))                 # (kh, kw, Cin, Cout)
    wi = jnp.arange(W)[:, None]
    wo = jnp.arange(W)[None, :]
    kw = wi - wo + 1                                         # (W, W)
    valid = (kw >= 0) & (kw <= 2)
    band = wt[:, jnp.clip(kw, 0, 2), :, :]                   # (3, W, W, Cin, Cout)
    band = jnp.where(valid[None, :, :, None, None], band, 0.0)
    band = jnp.transpose(band, (0, 1, 3, 2, 4))              # (3, W, Cin, W, Cout)
    return band.reshape(3, W * _Cin, W * _Cout).astype(dtype)


@functools.partial(jax.jit, static_argnames=("eps",))
def double_conv(x_nchw, w1, w2, gamma1, beta1, mean1, var1,
                gamma2, beta2, mean2, var2, eps=1e-5):
    """x_nchw: (N, Cin, H, W); w1: (Cmid, Cin, 3, 3); w2: (Cout, Cmid, 3, 3)."""
    N, Cin, H, W = x_nchw.shape
    Cmid = w1.shape[0]
    Cout = w2.shape[0]

    # ---- layout / parameter prep (plain JAX glue) ----
    # NCHW -> NHWC -> lane-dense (N, H, W*Cin).  No HBM-side zero padding.
    x2d = jnp.transpose(x_nchw, (0, 2, 3, 1)).reshape(N, H, W * Cin)

    # Banded conv weights (bf16 for the MXU), one (W*Cin, W*Cout) matrix per kh.
    bw1 = _banded_conv3x3_weights(w1, W)                     # (3, W*Cin,  W*Cmid)
    bw2 = _banded_conv3x3_weights(w2, W)                     # (3, W*Cmid, W*Cout)

    # Fold BN (inference semantics) into per-channel scale/bias, tiled across W
    # so they broadcast directly onto the lane-flattened activations.  Kept f32.
    inv1 = gamma1 * lax.rsqrt(var1 + eps)
    inv2 = gamma2 * lax.rsqrt(var2 + eps)
    s1 = jnp.tile(inv1, W).reshape(1, W * Cmid)
    b1 = jnp.tile(beta1 - mean1 * inv1, W).reshape(1, W * Cmid)
    s2 = jnp.tile(inv2, W).reshape(1, W * Cout)
    b2 = jnp.tile(beta2 - mean2 * inv2, W).reshape(1, W * Cout)

    out_flat = pl.pallas_call(
        _double_conv_kernel,
        out_shape=jax.ShapeDtypeStruct((N, H, W * Cout), jnp.float32),
        grid_spec=pltpu.PrefetchScalarGridSpec(
            num_scalar_prefetch=0,
            grid=(N,),
            in_specs=[
                pl.BlockSpec((1, H, W * Cin), lambda n: (n, 0, 0)),
                pl.BlockSpec((3, W * Cin, W * Cmid), lambda n: (0, 0, 0)),
                pl.BlockSpec((3, W * Cmid, W * Cout), lambda n: (0, 0, 0)),
                pl.BlockSpec((1, W * Cmid), lambda n: (0, 0)),
                pl.BlockSpec((1, W * Cmid), lambda n: (0, 0)),
                pl.BlockSpec((1, W * Cout), lambda n: (0, 0)),
                pl.BlockSpec((1, W * Cout), lambda n: (0, 0)),
            ],
            out_specs=pl.BlockSpec((1, H, W * Cout), lambda n: (n, 0, 0)),
        ),
        compiler_params=pltpu.CompilerParams(
            dimension_semantics=("parallel",),   # batch splits across TCs on v7x
            vmem_limit_bytes=48 * 1024 * 1024,
        ),
    )(x2d, bw1, bw2, s1, b1, s2, b2)

    # (N, H, W*Cout) -> NCHW
    out = out_flat.reshape(N, H, W, Cout)
    return jnp.transpose(out, (0, 3, 1, 2))


def _reference(x, w1, w2, gamma1, beta1, mean1, var1,
               gamma2, beta2, mean2, var2, eps=1e-5):
    """Pure-JAX f32 reference (NCHW, same semantics as the PyTorch module in eval mode)."""
    dn = ("NCHW", "OIHW", "NCHW")

    def bn_relu(y, g, b, m, v):
        y = (y - m[None, :, None, None]) / jnp.sqrt(v + eps)[None, :, None, None]
        y = y * g[None, :, None, None] + b[None, :, None, None]
        return jnp.maximum(y, 0.0)

    y = lax.conv_general_dilated(x, w1, (1, 1), "SAME", dimension_numbers=dn)
    y = bn_relu(y, gamma1, beta1, mean1, var1)
    y = lax.conv_general_dilated(y, w2, (1, 1), "SAME", dimension_numbers=dn)
    y = bn_relu(y, gamma2, beta2, mean2, var2)
    return y


if __name__ == "__main__":
    N, Cin, Cmid, Cout, H, W = 2, 4, 8, 8, 16, 16  # mid_channels defaults to out_channels

    key = jax.random.PRNGKey(0)
    kx, kw1, kw2, kg1, kb1, km1, kv1, kg2, kb2, km2, kv2 = jax.random.split(key, 11)

    x = jax.random.normal(kx, (N, Cin, H, W), jnp.float32)
    # Conv weights in PyTorch OIHW convention (bias=False).
    w1 = jax.random.normal(kw1, (Cmid, Cin, 3, 3), jnp.float32) * 0.2
    w2 = jax.random.normal(kw2, (Cout, Cmid, 3, 3), jnp.float32) * 0.2
    # Non-trivial BN parameters / running stats so the folding is exercised.
    gamma1 = 1.0 + 0.1 * jax.random.normal(kg1, (Cmid,), jnp.float32)
    beta1 = 0.1 * jax.random.normal(kb1, (Cmid,), jnp.float32)
    mean1 = 0.1 * jax.random.normal(km1, (Cmid,), jnp.float32)
    var1 = 1.0 + 0.1 * jax.random.uniform(kv1, (Cmid,), jnp.float32)
    gamma2 = 1.0 + 0.1 * jax.random.normal(kg2, (Cout,), jnp.float32)
    beta2 = 0.1 * jax.random.normal(kb2, (Cout,), jnp.float32)
    mean2 = 0.1 * jax.random.normal(km2, (Cout,), jnp.float32)
    var2 = 1.0 + 0.1 * jax.random.uniform(kv2, (Cout,), jnp.float32)

    out = double_conv(x, w1, w2, gamma1, beta1, mean1, var1,
                      gamma2, beta2, mean2, var2)
    out = jax.block_until_ready(out)

    ref = _reference(x, w1, w2, gamma1, beta1, mean1, var1,
                     gamma2, beta2, mean2, var2)
    assert out.shape == (N, Cout, H, W)
    # bf16 MXU operands with f32 accumulation: expected max abs error ~1e-2,
    # so the tolerance is relaxed relative to a pure-f32 kernel.
    err = float(jnp.max(jnp.abs(out - ref)))
    assert jnp.allclose(out, ref, atol=5e-2, rtol=5e-2), err

    print("KERNEL_OK")
</pallas_src>

<mosaic_0001>
module attributes {stable_mosaic.version = 11 : i64} {
  func.func @_double_conv_kernel(%arg0: i32, %arg1: memref<1x16x64xf32, #tpu.memory_space<vmem>>, %arg2: memref<3x64x128xbf16, #tpu.memory_space<vmem>>, %arg3: memref<3x128x128xbf16, #tpu.memory_space<vmem>>, %arg4: memref<1x128xf32, #tpu.memory_space<vmem>>, %arg5: memref<1x128xf32, #tpu.memory_space<vmem>>, %arg6: memref<1x128xf32, #tpu.memory_space<vmem>>, %arg7: memref<1x128xf32, #tpu.memory_space<vmem>>, %arg8: memref<1x16x128xf32, #tpu.memory_space<vmem>>) attributes {dimension_semantics = [#tpu.dimension_semantics<parallel>], iteration_bounds = array<i64: 2>, scalar_prefetch = 0 : i64, scratch_operands = 0 : i64, tpu.core_type = #tpu.core_type<tc>, window_params = [{transform_indices = @transform_0, window_bounds = array<i64: 1, 16, 64>}, {pipeline_mode = #tpu.pipeline_mode<synchronous>, transform_indices = @transform_1, window_bounds = array<i64: 3, 64, 128>}, {pipeline_mode = #tpu.pipeline_mode<synchronous>, transform_indices = @transform_2, window_bounds = array<i64: 3, 128, 128>}, {pipeline_mode = #tpu.pipeline_mode<synchronous>, transform_indices = @transform_3, window_bounds = array<i64: 1, 128>}, {pipeline_mode = #tpu.pipeline_mode<synchronous>, transform_indices = @transform_4, window_bounds = array<i64: 1, 128>}, {pipeline_mode = #tpu.pipeline_mode<synchronous>, transform_indices = @transform_5, window_bounds = array<i64: 1, 128>}, {pipeline_mode = #tpu.pipeline_mode<synchronous>, transform_indices = @transform_6, window_bounds = array<i64: 1, 128>}, {transform_indices = @transform_7, window_bounds = array<i64: 1, 16, 128>}]} {
    %c0 = arith.constant 0 : index
    %c0_0 = arith.constant 0 : index
    %c0_1 = arith.constant 0 : index
    %0 = vector.load %arg1[%c0, %c0_0, %c0_1] : memref<1x16x64xf32, #tpu.memory_space<vmem>>, vector<1x16x64xf32>
    %1 = vector.shape_cast %0 : vector<1x16x64xf32> to vector<16x64xf32>
    %cst = arith.constant 0.000000e+00 : f32
    %2 = vector.broadcast %cst : f32 to vector<1x64xf32>
    %3 = tpu.concatenate %2, %1, %2 in 0 : vector<1x64xf32>, vector<16x64xf32>, vector<1x64xf32> -> vector<18x64xf32>
    %4 = vector.extract_strided_slice %3 {offsets = [0, 0], sizes = [16, 64], strides = [1, 1]} : vector<18x64xf32> to vector<16x64xf32>
    %5 = arith.truncf %4 : vector<16x64xf32> to vector<16x64xbf16>
    %c0_2 = arith.constant 0 : index
    %c0_3 = arith.constant 0 : index
    %c0_4 = arith.constant 0 : index
    %6 = vector.load %arg2[%c0_2, %c0_3, %c0_4] : memref<3x64x128xbf16, #tpu.memory_space<vmem>>, vector<1x64x128xbf16>
    %7 = vector.shape_cast %6 : vector<1x64x128xbf16> to vector<64x128xbf16>
    %cst_5 = arith.constant dense<0.000000e+00> : vector<16x128xf32>
    %8 = tpu.matmul %5, %7, %cst_5 {dimension_numbers = #tpu.dot_dimension_numbers<[1], [0], [0], [1], [0, 0, 1, 1], [], []>} : vector<16x64xbf16>, vector<64x128xbf16>, vector<16x128xf32> -> vector<16x128xf32>
    %9 = vector.extract_strided_slice %3 {offsets = [1, 0], sizes = [16, 64], strides = [1, 1]} : vector<18x64xf32> to vector<16x64xf32>
    %10 = arith.truncf %9 : vector<16x64xf32> to vector<16x64xbf16>
    %c1 = arith.constant 1 : index
    %c0_6 = arith.constant 0 : index
    %c0_7 = arith.constant 0 : index
    %11 = vector.load %arg2[%c1, %c0_6, %c0_7] : memref<3x64x128xbf16, #tpu.memory_space<vmem>>, vector<1x64x128xbf16>
    %12 = vector.shape_cast %11 : vector<1x64x128xbf16> to vector<64x128xbf16>
    %cst_8 = arith.constant dense<0.000000e+00> : vector<16x128xf32>
    %13 = tpu.matmul %10, %12, %cst_8 {dimension_numbers = #tpu.dot_dimension_numbers<[1], [0], [0], [1], [0, 0, 1, 1], [], []>} : vector<16x64xbf16>, vector<64x128xbf16>, vector<16x128xf32> -> vector<16x128xf32>
    %14 = arith.addf %8, %13 : vector<16x128xf32>
    %15 = vector.extract_strided_slice %3 {offsets = [2, 0], sizes = [16, 64], strides = [1, 1]} : vector<18x64xf32> to vector<16x64xf32>
    %16 = arith.truncf %15 : vector<16x64xf32> to vector<16x64xbf16>
    %c2 = arith.constant 2 : index
    %c0_9 = arith.constant 0 : index
    %c0_10 = arith.constant 0 : index
    %17 = vector.load %arg2[%c2, %c0_9, %c0_10] : memref<3x64x128xbf16, #tpu.memory_space<vmem>>, vector<1x64x128xbf16>
    %18 = vector.shape_cast %17 : vector<1x64x128xbf16> to vector<64x128xbf16>
    %cst_11 = arith.constant dense<0.000000e+00> : vector<16x128xf32>
    %19 = tpu.matmul %16, %18, %cst_11 {dimension_numbers = #tpu.dot_dimension_numbers<[1], [0], [0], [1], [0, 0, 1, 1], [], []>} : vector<16x64xbf16>, vector<64x128xbf16>, vector<16x128xf32> -> vector<16x128xf32>
    %20 = arith.addf %14, %19 : vector<16x128xf32>
    %c0_12 = arith.constant 0 : index
    %c0_13 = arith.constant 0 : index
    %21 = vector.load %arg4[%c0_12, %c0_13] : memref<1x128xf32, #tpu.memory_space<vmem>>, vector<1x128xf32>
    %22 = vector.broadcast %21 : vector<1x128xf32> to vector<16x128xf32>
    %23 = arith.mulf %20, %22 : vector<16x128xf32>
    %c0_14 = arith.constant 0 : index
    %c0_15 = arith.constant 0 : index
    %24 = vector.load %arg5[%c0_14, %c0_15] : memref<1x128xf32, #tpu.memory_space<vmem>>, vector<1x128xf32>
    %25 = vector.broadcast %24 : vector<1x128xf32> to vector<16x128xf32>
    %26 = arith.addf %23, %25 : vector<16x128xf32>
    %cst_16 = arith.constant 0.000000e+00 : f32
    %27 = vector.broadcast %cst_16 : f32 to vector<16x128xf32>
    %28 = arith.maximumf %26, %27 : vector<16x128xf32>
    %cst_17 = arith.constant 0.000000e+00 : f32
    %29 = vector.broadcast %cst_17 : f32 to vector<1x128xf32>
    %30 = tpu.concatenate %29, %28, %29 in 0 : vector<1x128xf32>, vector<16x128xf32>, vector<1x128xf32> -> vector<18x128xf32>
    %31 = vector.extract_strided_slice %30 {offsets = [0, 0], sizes = [16, 128], strides = [1, 1]} : vector<18x128xf32> to vector<16x128xf32>
    %32 = arith.truncf %31 : vector<16x128xf32> to vector<16x128xbf16>
    %c0_18 = arith.constant 0 : index
    %c0_19 = arith.constant 0 : index
    %c0_20 = arith.constant 0 : index
    %33 = vector.load %arg3[%c0_18, %c0_19, %c0_20] : memref<3x128x128xbf16, #tpu.memory_space<vmem>>, vector<1x128x128xbf16>
    %34 = vector.shape_cast %33 : vector<1x128x128xbf16> to vector<128x128xbf16>
    %cst_21 = arith.constant dense<0.000000e+00> : vector<16x128xf32>
    %35 = tpu.matmul %32, %34, %cst_21 {dimension_numbers = #tpu.dot_dimension_numbers<[1], [0], [0], [1], [0, 0, 1, 1], [], []>} : vector<16x128xbf16>, vector<128x128xbf16>, vector<16x128xf32> -> vector<16x128xf32>
    %36 = vector.extract_strided_slice %30 {offsets = [1, 0], sizes = [16, 128], strides = [1, 1]} : vector<18x128xf32> to vector<16x128xf32>
    %37 = arith.truncf %36 : vector<16x128xf32> to vector<16x128xbf16>
    %c1_22 = arith.constant 1 : index
    %c0_23 = arith.constant 0 : index
    %c0_24 = arith.constant 0 : index
    %38 = vector.load %arg3[%c1_22, %c0_23, %c0_24] : memref<3x128x128xbf16, #tpu.memory_space<vmem>>, vector<1x128x128xbf16>
    %39 = vector.shape_cast %38 : vector<1x128x128xbf16> to vector<128x128xbf16>
    %cst_25 = arith.constant dense<0.000000e+00> : vector<16x128xf32>
    %40 = tpu.matmul %37, %39, %cst_25 {dimension_numbers = #tpu.dot_dimension_numbers<[1], [0], [0], [1], [0, 0, 1, 1], [], []>} : vector<16x128xbf16>, vector<128x128xbf16>, vector<16x128xf32> -> vector<16x128xf32>
    %41 = arith.addf %35, %40 : vector<16x128xf32>
    %42 = vector.extract_strided_slice %30 {offsets = [2, 0], sizes = [16, 128], strides = [1, 1]} : vector<18x128xf32> to vector<16x128xf32>
    %43 = arith.truncf %42 : vector<16x128xf32> to vector<16x128xbf16>
    %c2_26 = arith.constant 2 : index
    %c0_27 = arith.constant 0 : index
    %c0_28 = arith.constant 0 : index
    %44 = vector.load %arg3[%c2_26, %c0_27, %c0_28] : memref<3x128x128xbf16, #tpu.memory_space<vmem>>, vector<1x128x128xbf16>
    %45 = vector.shape_cast %44 : vector<1x128x128xbf16> to vector<128x128xbf16>
    %cst_29 = arith.constant dense<0.000000e+00> : vector<16x128xf32>
    %46 = tpu.matmul %43, %45, %cst_29 {dimension_numbers = #tpu.dot_dimension_numbers<[1], [0], [0], [1], [0, 0, 1, 1], [], []>} : vector<16x128xbf16>, vector<128x128xbf16>, vector<16x128xf32> -> vector<16x128xf32>
    %47 = arith.addf %41, %46 : vector<16x128xf32>
    %c0_30 = arith.constant 0 : index
    %c0_31 = arith.constant 0 : index
    %48 = vector.load %arg6[%c0_30, %c0_31] : memref<1x128xf32, #tpu.memory_space<vmem>>, vector<1x128xf32>
    %49 = vector.broadcast %48 : vector<1x128xf32> to vector<16x128xf32>
    %50 = arith.mulf %47, %49 : vector<16x128xf32>
    %c0_32 = arith.constant 0 : index
    %c0_33 = arith.constant 0 : index
    %51 = vector.load %arg7[%c0_32, %c0_33] : memref<1x128xf32, #tpu.memory_space<vmem>>, vector<1x128xf32>
    %52 = vector.broadcast %51 : vector<1x128xf32> to vector<16x128xf32>
    %53 = arith.addf %50, %52 : vector<16x128xf32>
    %cst_34 = arith.constant 0.000000e+00 : f32
    %54 = vector.broadcast %cst_34 : f32 to vector<16x128xf32>
    %55 = arith.maximumf %53, %54 : vector<16x128xf32>
    %c0_35 = arith.constant 0 : index
    %c0_36 = arith.constant 0 : index
    %c0_37 = arith.constant 0 : index
    %56 = vector.load %arg8[%c0_35, %c0_36, %c0_37] : memref<1x16x128xf32, #tpu.memory_space<vmem>>, vector<1x16x128xf32>
    %57 = vector.shape_cast %56 : vector<1x16x128xf32> to vector<16x128xf32>
    %58 = vector.shape_cast %55 : vector<16x128xf32> to vector<1x16x128xf32>
    tpu.vector_store %arg8[%c0_35, %c0_36, %c0_37], %58 {strides = array<i32>} : memref<1x16x128xf32, #tpu.memory_space<vmem>>, vector<1x16x128xf32>,
    return
  }
  func.func @transform_0(%arg0: i32) -> (i32, i32, i32) {
    %c0_i32 = arith.constant 0 : i32
    %c0_i32_0 = arith.constant 0 : i32
    %c0_i32_1 = arith.constant 0 : i32
    return %arg0, %c0_i32, %c0_i32_0 : i32, i32, i32
  }
  func.func @transform_1(%arg0: i32) -> (i32, i32, i32) {
    %c0_i32 = arith.constant 0 : i32
    %c0_i32_0 = arith.constant 0 : i32
    %c0_i32_1 = arith.constant 0 : i32
    %c0_i32_2 = arith.constant 0 : i32
    return %c0_i32, %c0_i32_0, %c0_i32_1 : i32, i32, i32
  }
  func.func @transform_2(%arg0: i32) -> (i32, i32, i32) {
    %c0_i32 = arith.constant 0 : i32
    %c0_i32_0 = arith.constant 0 : i32
    %c0_i32_1 = arith.constant 0 : i32
    %c0_i32_2 = arith.constant 0 : i32
    return %c0_i32, %c0_i32_0, %c0_i32_1 : i32, i32, i32
  }
  func.func @transform_3(%arg0: i32) -> (i32, i32) {
    %c0_i32 = arith.constant 0 : i32
    %c0_i32_0 = arith.constant 0 : i32
    %c0_i32_1 = arith.constant 0 : i32
    return %c0_i32, %c0_i32_0 : i32, i32
  }
  func.func @transform_4(%arg0: i32) -> (i32, i32) {
    %c0_i32 = arith.constant 0 : i32
    %c0_i32_0 = arith.constant 0 : i32
    %c0_i32_1 = arith.constant 0 : i32
    return %c0_i32, %c0_i32_0 : i32, i32
  }
  func.func @transform_5(%arg0: i32) -> (i32, i32) {
    %c0_i32 = arith.constant 0 : i32
    %c0_i32_0 = arith.constant 0 : i32
    %c0_i32_1 = arith.constant 0 : i32
    return %c0_i32, %c0_i32_0 : i32, i32
  }
  func.func @transform_6(%arg0: i32) -> (i32, i32) {
    %c0_i32 = arith.constant 0 : i32
    %c0_i32_0 = arith.constant 0 : i32
    %c0_i32_1 = arith.constant 0 : i32
    return %c0_i32, %c0_i32_0 : i32, i32
  }
  func.func @transform_7(%arg0: i32) -> (i32, i32, i32) {
    %c0_i32 = arith.constant 0 : i32
    %c0_i32_0 = arith.constant 0 : i32
    %c0_i32_1 = arith.constant 0 : i32
    return %arg0, %c0_i32, %c0_i32_0 : i32, i32, i32
  }
}

</mosaic_0001>

<llo_original>
// kernel: tile.23
$region0: #{tile.23}
  #allocation0 [shape = 's32[1]{0}', space=sflag, size = 0x4, scoped, tag = 'scoped memory for tile.23']
  %s0 = inlined_call_operand.vmem [shape: f32[8], index: 0, kind: input, shape index: {}]
  %s1 = inlined_call_operand.vmem [shape: f32[16,8], index: 1, kind: output, shape index: {}]
  // Predicated region
  $region2: #{tile.23} parent=0 // pred_check
    _
  $region3: #{tile.23} parent=0 // pred_check_branch
    %3 = sbr.rel (0) target = $region5
  $region4: #{tile.23} parent=0 // pred_region
    _
  $region5: #{tile.23} parent=0 // pred_fallthru
    _
  %v4 = vld [vmem:[%s0] ss:$0 sm:$0xff]
  %5 = vst [vmem:[%s1] sm:$0xff] %v4
  %s6 = scalar_lea.vmem %s1, 8
  %7 = vst [vmem:[%s6] sm:$0xff] %v4

// kernel: tile.24
$region0: #{tile.24}
  %s0 = inlined_call_operand.vmem [shape: f32[16,8], index: 0, kind: input, shape index: {}]
  %s1 = inlined_call_operand.vmem [shape: f32[1,128], index: 1, kind: output, shape index: {}]
  $region1: #{tile.24} parent=0
    #allocation0 [shape = 'u8[4096]{0}', space=vmem, size = 0x1000, scoped, tag = 'scoped mem for output reshape']
    %v2 = vld [vmem:[%s0] sm:$0x1]
    %vm3 = vcmask 64512
    %4 = vst.msk [vmem:[#allocation0] sm:$0x1] %vm3, %v2
    %s5 = scalar_lea.vmem %s0, 15
    %v6 = vld [vmem:[%s5] sm:$0x1]
    %7 = vrot.lane.b32.xlu0 %v6, 120
    %v8 = vpop.permute.xlu0 %7
    %vm9 = vcmask 1048512
    %10 = vst.msk [vmem:[#allocation0] sm:$0x1] %vm9, %v8
    %s11 = scalar_lea.vmem %s0, 14
    %v12 = vld [vmem:[%s11] sm:$0x1]
    %13 = vrot.lane.b32.xlu0 %v12, 112
    %v14 = vpop.permute.xlu0 %13
    %vm15 = vcmask 982912
    %16 = vst.msk [vmem:[#allocation0] sm:$0x1] %vm15, %v14
    %s17 = scalar_lea.vmem %s0, 13
    %v18 = vld [vmem:[%s17] sm:$0x1]
    %19 = vrot.lane.b32.xlu0 %v18, 104
    %v20 = vpop.permute.xlu0 %19
    %vm21 = vcmask 917312
    %22 = vst.msk [vmem:[#allocation0] sm:$0x1] %vm21, %v20
    %s23 = scalar_lea.vmem %s0, 12
    %v24 = vld [vmem:[%s23] sm:$0x1]
    %25 = vrot.lane.b32.xlu0 %v24, 96
    %v26 = vpop.permute.xlu0 %25
    %vm27 = vcmask 851712
    %28 = vst.msk [vmem:[#allocation0] sm:$0x1] %vm27, %v26
    %s29 = scalar_lea.vmem %s0, 11
    %v30 = vld [vmem:[%s29] sm:$0x1]
    %31 = vrot.lane.b32.xlu0 %v30, 88
    %v32 = vpop.permute.xlu0 %31
    %vm33 = vcmask 786112
    %34 = vst.msk [vmem:[#allocation0] sm:$0x1] %vm33, %v32
    %s35 = scalar_lea.vmem %s0, 10
    %v36 = vld [vmem:[%s35] sm:$0x1]
    %37 = vrot.lane.b32.xlu0 %v36, 80
    %v38 = vpop.permute.xlu0 %37
    %vm39 = vcmask 720512
    %40 = vst.msk [vmem:[#allocation0] sm:$0x1] %vm39, %v38
    %s41 = scalar_lea.vmem %s0, 9
    %v42 = vld [vmem:[%s41] sm:$0x1]
    %43 = vrot.lane.b32.xlu0 %v42, 72
    %v44 = vpop.permute.xlu0 %43
    %vm45 = vcmask 654912
    %46 = vst.msk [vmem:[#allocation0] sm:$0x1] %vm45, %v44
    %s47 = scalar_lea.vmem %s0, 8
    %v48 = vld [vmem:[%s47] sm:$0x1]
    %49 = vrot.lane.b32.xlu0 %v48, 64
    %v50 = vpop.permute.xlu0 %49
    %vm51 = vcmask 589312
    %52 = vst.msk [vmem:[#allocation0] sm:$0x1] %vm51, %v50
    %s53 = scalar_lea.vmem %s0, 7
    %v54 = vld [vmem:[%s53] sm:$0x1]
    %55 = vrot.lane.b32.xlu0 %v54, 56
    %v56 = vpop.permute.xlu0 %55
    %vm57 = vcmask 523712
    %58 = vst.msk [vmem:[#allocation0] sm:$0x1] %vm57, %v56
    %s59 = scalar_lea.vmem %s0, 6
    %v60 = vld [vmem:[%s59] sm:$0x1]
    %61 = vrot.lane.b32.xlu0 %v60, 48
    %v62 = vpop.permute.xlu0 %61
    %vm63 = vcmask 458112
    %64 = vst.msk [vmem:[#allocation0] sm:$0x1] %vm63, %v62
    %s65 = scalar_lea.vmem %s0, 5
    %v66 = vld [vmem:[%s65] sm:$0x1]
    %67 = vrot.lane.b32.xlu0 %v66, 40
    %v68 = vpop.permute.xlu0 %67
    %vm69 = vcmask 392512
    %70 = vst.msk [vmem:[#allocation0] sm:$0x1] %vm69, %v68
    %s71 = scalar_lea.vmem %s0, 4
    %v72 = vld [vmem:[%s71] sm:$0x1]
    %73 = vrot.lane.b32.xlu0 %v72, 32
    %v74 = vpop.permute.xlu0 %73
    %vm75 = vcmask 326912
    %76 = vst.msk [vmem:[#allocation0] sm:$0x1] %vm75, %v74
    %s77 = scalar_lea.vmem %s0, 3
    %v78 = vld [vmem:[%s77] sm:$0x1]
    %79 = vrot.lane.b32.xlu0 %v78, 24
    %v80 = vpop.permute.xlu0 %79
    %vm81 = vcmask 261312
    %82 = vst.msk [vmem:[#allocation0] sm:$0x1] %vm81, %v80
    %s83 = scalar_lea.vmem %s0, 2
    %v84 = vld [vmem:[%s83] sm:$0x1]
    %85 = vrot.lane.b32.xlu0 %v84, 16
    %v86 = vpop.permute.xlu0 %85
    %vm87 = vcmask 195712
    %88 = vst.msk [vmem:[#allocation0] sm:$0x1] %vm87, %v86
    %s89 = scalar_lea.vmem %s0, 1
    %v90 = vld [vmem:[%s89] sm:$0x1]
    %91 = vrot.lane.b32.xlu0 %v90, 8
    %v92 = vpop.permute.xlu0 %91
    %vm93 = vcmask 130112
    %94 = vst.msk [vmem:[#allocation0] sm:$0x1] %vm93, %v92
    %s96 = ssub.s32 2, 1
    %v97 = vld [vmem:[#allocation0] sm:%s96]
    %s99 = ssub.s32 2, 1
    %100 = vst [vmem:[%s1] sm:%s99] %v97

// kernel: double_conv.1
$region0: #{double_conv.1}
  #allocation0 [shape = 'u32[]', space=smem, size = 0x4, offset = 0x4, fixed_abs, tag = 'smem constant byte address 0x4 - core index']
  #allocation1 [shape = 'u32[72,128]{1,0:T(1,128)}', space=vmem, size = 0x9000, scoped, tag = 'internal scratch']
  %s0 = inlined_call_operand.vmem [shape: f32[2,16,64], index: 0, kind: input, shape index: {}]
  %s1 = inlined_call_operand.vmem [shape: bf16[3,64,128], index: 1, kind: input, shape index: {}]
  %s2 = inlined_call_operand.vmem [shape: bf16[3,128,128], index: 2, kind: input, shape index: {}]
  %s3 = inlined_call_operand.vmem [shape: f32[1,128], index: 3, kind: input, shape index: {}]
  %s4 = inlined_call_operand.vmem [shape: f32[1,128], index: 4, kind: input, shape index: {}]
  %s5 = inlined_call_operand.vmem [shape: f32[1,128], index: 5, kind: input, shape index: {}]
  %s6 = inlined_call_operand.vmem [shape: f32[1,128], index: 6, kind: input, shape index: {}]
  %s7 = inlined_call_operand.vmem [shape: f32[2,16,128], index: 7, kind: output, shape index: {}]
  %s8 = sld [smem:[#allocation0]]
  $region61: #{double_conv.1} parent=0
    _
  %s10 = ssub.s32 1, %s8
  %s11 = scalar_select 0, %s10, %s8
  loop: start=0, step=1, limit=4
  $region2: #{double_conv.1} parent=0 // loop_pre_header
    _
  $region3: #{double_conv.1} parent=0 // loop_header
    %s13 = sphi 0, %s17
    %p14 = scmp.ge.s32.totalorder %s13, 4
    %s23 = sphi 0, %s25
    %s26 = sphi 0, %s23
    %s27 = sphi 0, %s26
    %s43 = sphi 0, %s27
    %s47 = sphi 0, %s47
    %s49 = sphi 0, %s47
    %s50 = sphi 0, %s49
    %s64 = sphi 0, %s50
    %s68 = sphi 0, %s68
    %s70 = sphi 0, %s68
    %s71 = sphi 0, %s70
    %s85 = sphi 0, %s71
    %s89 = sphi 0, %s89
    %s91 = sphi 0, %s89
    %s92 = sphi 0, %s91
    %s106 = sphi 0, %s92
    %s110 = sphi 0, %s110
    %s112 = sphi 0, %s110
    %s113 = sphi 0, %s112
    %s127 = sphi 0, %s113
    %s131 = sphi 0, %s131
    %s133 = sphi 0, %s131
    %s134 = sphi 0, %s133
    %s148 = sphi 0, %s134
    %s152 = sphi 0, %s152
    %s154 = sphi 0, %s152
    %s155 = sphi 0, %s154
    %s169 = sphi 0, %s155
    %s175 = sphi 0, %s177
    %s178 = sphi 0, %s175
    %s179 = sphi 0, %s178
    %s195 = sphi 0, %s179
  $region4: #{double_conv.1} parent=0 // loop_header_branch
    %16 = sbr.rel (%p14) target = $region8
  $region5: #{double_conv.1} parent=0 // loop_body
    %s18 = ssub.s32 %s13, 1
    %s19 = ssub.s32 %s13, 2
    %s20 = sadd.s32 %s13, 1
    %s21 = ssub.s32 %s13, %s20
    %p22 = scmp.eq.s32.totalorder %s21, 0
    %s24 = sadd.s32 %s23, 1
    %s25 = scalar_select %p22, %s23, %s24
    %p28 = pneg %p22
    %p29 = scmp.eq.s32.totalorder %s13, 1
    %p30 = por %p28, %p29
    %p31 = scmp.ne.s32.totalorder %s23, %s26
    %p32 = scmp.eq.s32.totalorder %s13, 0
    %p33 = por %p31, %p32
    %p34 = scmp.ne.s32.totalorder %s23, %s26
    %p35 = scmp.eq.s32.totalorder %s18, 1
    %p36 = por %p34, %p35
    %p37 = scmp.ne.s32.totalorder %s26, %s27
    %p38 = scmp.eq.s32.totalorder %s18, 0
    %p39 = por %p37, %p38
    %p40 = scmp.ne.s32.totalorder %s26, %s27
    %p41 = scmp.eq.s32.totalorder %s19, 1
    %p42 = por %p40, %p41
    %p44 = scmp.ne.s32.totalorder %s27, %s43
    %p45 = scmp.eq.s32.totalorder %s19, 0
    %p46 = por %p44, %p45
    %s48 = sadd.s32 %s47, 1
    %p51 = scmp.eq.s32.totalorder %s13, 1
    %p52 = scmp.ne.s32.totalorder %s47, %s49
    %p53 = scmp.eq.s32.totalorder %s13, 0
    %p54 = por %p52, %p53
    %p55 = scmp.ne.s32.totalorder %s47, %s49
    %p56 = scmp.eq.s32.totalorder %s18, 1
    %p57 = por %p55, %p56
    %p58 = scmp.ne.s32.totalorder %s49, %s50
    %p59 = scmp.eq.s32.totalorder %s18, 0
    %p60 = por %p58, %p59
    %p61 = scmp.ne.s32.totalorder %s49, %s50
    %p62 = scmp.eq.s32.totalorder %s19, 1
    %p63 = por %p61, %p62
    %p65 = scmp.ne.s32.totalorder %s50, %s64
    %p66 = scmp.eq.s32.totalorder %s19, 0
    %p67 = por %p65, %p66
    %s69 = sadd.s32 %s68, 1
    %p72 = scmp.eq.s32.totalorder %s13, 1
    %p73 = scmp.ne.s32.totalorder %s68, %s70
    %p74 = scmp.eq.s32.totalorder %s13, 0
    %p75 = por %p73, %p74
    %p76 = scmp.ne.s32.totalorder %s68, %s70
    %p77 = scmp.eq.s32.totalorder %s18, 1
    %p78 = por %p76, %p77
    %p79 = scmp.ne.s32.totalorder %s70, %s71
    %p80 = scmp.eq.s32.totalorder %s18, 0
    %p81 = por %p79, %p80
    %p82 = scmp.ne.s32.totalorder %s70, %s71
    %p83 = scmp.eq.s32.totalorder %s19, 1
    %p84 = por %p82, %p83
    %p86 = scmp.ne.s32.totalorder %s71, %s85
    %p87 = scmp.eq.s32.totalorder %s19, 0
    %p88 = por %p86, %p87
    %s90 = sadd.s32 %s89, 1
    %p93 = scmp.eq.s32.totalorder %s13, 1
    %p94 = scmp.ne.s32.totalorder %s89, %s91
    %p95 = scmp.eq.s32.totalorder %s13, 0
    %p96 = por %p94, %p95
    %p97 = scmp.ne.s32.totalorder %s89, %s91
    %p98 = scmp.eq.s32.totalorder %s18, 1
    %p99 = por %p97, %p98
    %p100 = scmp.ne.s32.totalorder %s91, %s92
    %p101 = scmp.eq.s32.totalorder %s18, 0
    %p102 = por %p100, %p101
    %p103 = scmp.ne.s32.totalorder %s91, %s92
    %p104 = scmp.eq.s32.totalorder %s19, 1
    %p105 = por %p103, %p104
    %p107 = scmp.ne.s32.totalorder %s92, %s106
    %p108 = scmp.eq.s32.totalorder %s19, 0
    %p109 = por %p107, %p108
    %s111 = sadd.s32 %s110, 1
    %p114 = scmp.eq.s32.totalorder %s13, 1
    %p115 = scmp.ne.s32.totalorder %s110, %s112
    %p116 = scmp.eq.s32.totalorder %s13, 0
    %p117 = por %p115, %p116
    %p118 = scmp.ne.s32.totalorder %s110, %s112
    %p119 = scmp.eq.s32.totalorder %s18, 1
    %p120 = por %p118, %p119
    %p121 = scmp.ne.s32.totalorder %s112, %s113
    %p122 = scmp.eq.s32.totalorder %s18, 0
    %p123 = por %p121, %p122
    %p124 = scmp.ne.s32.totalorder %s112, %s113
    %p125 = scmp.eq.s32.totalorder %s19, 1
    %p126 = por %p124, %p125
    %p128 = scmp.ne.s32.totalorder %s113, %s127
    %p129 = scmp.eq.s32.totalorder %s19, 0
    %p130 = por %p128, %p129
    %s132 = sadd.s32 %s131, 1
    %p135 = scmp.eq.s32.totalorder %s13, 1
    %p136 = scmp.ne.s32.totalorder %s131, %s133
    %p137 = scmp.eq.s32.totalorder %s13, 0
    %p138 = por %p136, %p137
    %p139 = scmp.ne.s32.totalorder %s131, %s133
    %p140 = scmp.eq.s32.totalorder %s18, 1
    %p141 = por %p139, %p140
    %p142 = scmp.ne.s32.totalorder %s133, %s134
    %p143 = scmp.eq.s32.totalorder %s18, 0
    %p144 = por %p142, %p143
    %p145 = scmp.ne.s32.totalorder %s133, %s134
    %p146 = scmp.eq.s32.totalorder %s19, 1
    %p147 = por %p145, %p146
    %p149 = scmp.ne.s32.totalorder %s134, %s148
    %p150 = scmp.eq.s32.totalorder %s19, 0
    %p151 = por %p149, %p150
    %s153 = sadd.s32 %s152, 1
    %p156 = scmp.eq.s32.totalorder %s13, 1
    %p157 = scmp.ne.s32.totalorder %s152, %s154
    %p158 = scmp.eq.s32.totalorder %s13, 0
    %p159 = por %p157, %p158
    %p160 = scmp.ne.s32.totalorder %s152, %s154
    %p161 = scmp.eq.s32.totalorder %s18, 1
    %p162 = por %p160, %p161
    %p163 = scmp.ne.s32.totalorder %s154, %s155
    %p164 = scmp.eq.s32.totalorder %s18, 0
    %p165 = por %p163, %p164
    %p166 = scmp.ne.s32.totalorder %s154, %s155
    %p167 = scmp.eq.s32.totalorder %s19, 1
    %p168 = por %p166, %p167
    %p170 = scmp.ne.s32.totalorder %s155, %s169
    %p171 = scmp.eq.s32.totalorder %s19, 0
    %p172 = por %p170, %p171
    %s173 = ssub.s32 %s13, %s20
    %p174 = scmp.eq.s32.totalorder %s173, 0
    %s176 = sadd.s32 %s175, 1
    %s177 = scalar_select %p174, %s175, %s176
    %p180 = pneg %p174
    %p181 = scmp.eq.s32.totalorder %s13, 1
    %p182 = por %p180, %p181
    %p183 = scmp.ne.s32.totalorder %s175, %s178
    %p184 = scmp.eq.s32.totalorder %s13, 0
    %p185 = por %p183, %p184
    %p186 = scmp.ne.s32.totalorder %s175, %s178
    %p187 = scmp.eq.s32.totalorder %s18, 1
    %p188 = por %p186, %p187
    %p189 = scmp.ne.s32.totalorder %s178, %s179
    %p190 = scmp.eq.s32.totalorder %s18, 0
    %p191 = por %p189, %p190
    %p192 = scmp.ne.s32.totalorder %s178, %s179
    %p193 = scmp.eq.s32.totalorder %s19, 1
    %p194 = por %p192, %p193
    %p196 = scmp.ne.s32.totalorder %s179, %s195
    %p197 = scmp.eq.s32.totalorder %s19, 0
    %p198 = por %p196, %p197
    %p199 = scmp.le.s32.totalorder 1, %s13
    %p200 = scmp.lt.s32.totalorder %s13, 3
    %p201 = pnand %p199, %p200
    %p202 = pneg %p201
    // Predicated region
    $region9: #{double_conv.1} parent=5 // pred_check
      _
    $region10: #{double_conv.1} parent=5 // pred_check_branch
      %204 = sbr.rel (%p201) target = $region12
    $region11: #{double_conv.1} parent=5 // pred_region
      %s205 = ssub.s32 %s13, 1
      // Predicated region
      $region13: #{double_conv.1} parent=11 // pred_check
        %p206 = pneg %p60
      $region14: #{double_conv.1} parent=11 // pred_check_branch
        %208 = sbr.rel (%p206) target = $region16
      $region15: #{double_conv.1} parent=11 // pred_region
        _
      $region16: #{double_conv.1} parent=11 // pred_fallthru
        _
      // Predicated region
      $region17: #{double_conv.1} parent=11 // pred_check
        %p209 = pneg %p81
      $region18: #{double_conv.1} parent=11 // pred_check_branch
        %211 = sbr.rel (%p209) target = $region20
      $region19: #{double_conv.1} parent=11 // pred_region
        _
      $region20: #{double_conv.1} parent=11 // pred_fallthru
        _
      // Predicated region
      $region21: #{double_conv.1} parent=11 // pred_check
        %p212 = pneg %p102
      $region22: #{double_conv.1} parent=11 // pred_check_branch
        %214 = sbr.rel (%p212) target = $region24
      $region23: #{double_conv.1} parent=11 // pred_region
        _
      $region24: #{double_conv.1} parent=11 // pred_fallthru
        _
      // Predicated region
      $region25: #{double_conv.1} parent=11 // pred_check
        %p215 = pneg %p123
      $region26: #{double_conv.1} parent=11 // pred_check_branch
        %217 = sbr.rel (%p215) target = $region28
      $region27: #{double_conv.1} parent=11 // pred_region
        _
      $region28: #{double_conv.1} parent=11 // pred_fallthru
        _
      // Predicated region
      $region29: #{double_conv.1} parent=11 // pred_check
        %p218 = pneg %p144
      $region30: #{double_conv.1} parent=11 // pred_check_branch
        %220 = sbr.rel (%p218) target = $region32
      $region31: #{double_conv.1} parent=11 // pred_region
        _
      $region32: #{double_conv.1} parent=11 // pred_fallthru
        _
      // Predicated region
      $region33: #{double_conv.1} parent=11 // pred_check
        %p221 = pneg %p165
      $region34: #{double_conv.1} parent=11 // pred_check_branch
        %223 = sbr.rel (%p221) target = $region36
      $region35: #{double_conv.1} parent=11 // pred_region
        _
      $region36: #{double_conv.1} parent=11 // pred_fallthru
        _
    $region12: #{double_conv.1} parent=5 // pred_fallthru
      _
    %p224 = scmp.lt.s32.totalorder %s13, 2
    // Predicated region
    $region37: #{double_conv.1} parent=5 // pred_check
      %p225 = pneg %p224
    $region38: #{double_conv.1} parent=5 // pred_check_branch
      %227 = sbr.rel (%p225) target = $region40
    $region39: #{double_conv.1} parent=5 // pred_region
      // Predicated region
      $region41: #{double_conv.1} parent=39 // pred_check
        %p228 = pneg %p33
      $region42: #{double_conv.1} parent=39 // pred_check_branch
        %230 = sbr.rel (%p228) target = $region44
      $region43: #{double_conv.1} parent=39 // pred_region
        %p231 = scmp.lt.s32.totalorder %s13, 1
        %s232 = scalar_select %p231, %s13, 1
        %s233 = smul.addr %s232, 2
        %s234 = smul.addr %s233, 8
        %s235 = scalar_lea.vmem %s0, %s234
      $region44: #{double_conv.1} parent=39 // pred_fallthru
        _
    $region40: #{double_conv.1} parent=5 // pred_fallthru
      _
    %p236 = scmp.le.s32.totalorder 1, %s13
    %p237 = scmp.lt.s32.totalorder %s13, 3
    %p238 = pnand %p236, %p237
    %p239 = pneg %p238
    // Predicated region
    $region45: #{double_conv.1} parent=5 // pred_check
      _
    $region46: #{double_conv.1} parent=5 // pred_check_branch
      %241 = sbr.rel (%p238) target = $region48
    $region47: #{double_conv.1} parent=5 // pred_region
      %s242 = ssub.s32 %s13, 1
      %p243 = scmp.lt.s32.totalorder %s18, 1
      %s244 = scalar_select %p243, %s18, 1
      %s245 = smul.addr %s244, 2
      %s246 = smul.addr %s245, 8
      %s247 = scalar_lea.vmem %s0, %s246
      %p248 = pneg %p39
      %p249 = pneg %p36
      %p250 = pneg %p60
      %p251 = pneg %p57
      %p252 = pneg %p81
      %p253 = pneg %p78
      %p254 = pneg %p102
      %p255 = pneg %p99
      %p256 = pneg %p123
      %p257 = pneg %p120
      %p258 = pneg %p144
      %p259 = pneg %p141
      %p260 = pneg %p165
      %p261 = pneg %p162
      %p262 = pneg %p191
      %p263 = pneg %p188
      %p264 = scmp.lt.s32.totalorder %s18, 1
      %s265 = scalar_select %p264, %s18, 1
      %s266 = smul.addr %s265, 2
      %s267 = smul.addr %s266, 8
      %s268 = scalar_lea.vmem %s7, %s267
      %p269 = scmp.lt.s32.totalorder %s18, 1
      %s270 = scalar_select %p269, %s18, 1
      %s271 = smul.addr %s270, 2
      %s272 = smul.addr %s271, 8
      %s273 = scalar_lea.vmem %s0, %s272
      %p274 = scmp.lt.s32.totalorder %s18, 1
      %s275 = scalar_select %p274, %s18, 1
      %s276 = smul.addr %s275, 2
      %s277 = smul.addr %s276, 8
      %s278 = scalar_lea.vmem %s7, %s277
      %v280 = vld [vmem:[%s273] sm:$0xff]
      %v281 = vld [vmem:[%s273 + $0x8] sm:$0xff]
      %vm284 = vcmask 1040384
      %v285 = vrot.slane %v280, 7
      %v286 = vrot.slane %v281, 7
      %v287 = vsel %vm284, %v285, %v286
      %v291 = vsel %vm284, 0.0, %v285
      %v292 = vsel %vm284, %v286, 0.0
      %v293 = vpack.c.bf16 %v287, %v291
      %v294 = vld [vmem:[%s1] sm:$0xf]
      %v295 = vld [vmem:[%s1 + $0x4] sm:$0xf]
      %v296 = vld [vmem:[%s1 + $0x8] sm:$0xf]
      %v297 = vld [vmem:[%s1 + $0xc] sm:$0xf]
      %v298 = vld [vmem:[%s1 + $0x10] sm:$0xf]
      %v299 = vld [vmem:[%s1 + $0x14] sm:$0xf]
      %v300 = vld [vmem:[%s1 + $0x18] sm:$0xf]
      %v301 = vld [vmem:[%s1 + $0x1c] sm:$0xf]
      %v302 = vpack.c.bf16 %v292, %v292
      %s303 = scalar_lea.vmem %s1, 32
      %v304 = vld [vmem:[%s303] sm:$0xf]
      %v305 = vld [vmem:[%s303 + $0x4] sm:$0xf]
      %v306 = vld [vmem:[%s303 + $0x8] sm:$0xf]
      %v307 = vld [vmem:[%s303 + $0xc] sm:$0xf]
      %v308 = vld [vmem:[%s303 + $0x10] sm:$0xf]
      %v309 = vld [vmem:[%s303 + $0x14] sm:$0xf]
      %v310 = vld [vmem:[%s303 + $0x18] sm:$0xf]
      %v311 = vld [vmem:[%s303 + $0x1c] sm:$0xf]
      %vm312 = vsmask.f32 7424
      %v314 = vshrl.u32 %v293, 16
      %v316 = vshll.u32 %v293, 16
      %v318 = vrot.slane %v316, 1
      %v319 = vor.u32 %v314, %v318
      %v321 = vshll.u32 %v302, 16
      %v323 = vrot.slane %v321, 1
      %v324 = vsel %vm312, %v319, %v323
      %v333 = vunpack.c.l.b16 %v304
      %v334 = vunpack.c.l.b16 %v305
      %v335 = vunpack.c.l.b16 %v306
      %v336 = vunpack.c.l.b16 %v307
      %v337 = vunpack.c.l.b16 %v308
      %v338 = vunpack.c.l.b16 %v309
      %v339 = vunpack.c.l.b16 %v310
      %v340 = vunpack.c.l.b16 %v311
      %v341 = vpack.c.b16 %v334, %v333
      %v342 = vpack.c.b16 %v336, %v335
      %v343 = vpack.c.b16 %v338, %v337
      %v344 = vpack.c.b16 %v340, %v339
      %vm349 = vcmask 523264
      %v351 = vsel %vm349, %v324, 0
      %353 = vmatpush.bf16.msra.mxu0 0
      %354 = vmatpush.bf16.msra.mxu0 0
      %355 = vmatpush.bf16.msra.mxu0 0
      %356 = vmatpush.bf16.msra.mxu0 0
      %357 = vmatpush.bf16.msra.mxu0 %v344
      %358 = vmatpush.bf16.msra.mxu0 %v343
      %359 = vmatpush.bf16.msra.mxu0 %v342
      %360 = vmatpush.bf16.msra.mxu0 %v341
      %361 = vmatmul.bf16.gmra.mxu0 %v351
      %v362 = vpop.f32.mrf.mxu0
      %v363 = vadd.f32 0.0, %v362
      %v364 = vpop.f32.mrf.mxu0
      %v365 = vadd.f32 0.0, %v364
      %366 = vdwg.mxu0
      %v375 = vunpack.c.l.b16 %v294
      %v376 = vunpack.c.l.b16 %v295
      %v377 = vunpack.c.l.b16 %v296
      %v378 = vunpack.c.l.b16 %v297
      %v379 = vunpack.c.l.b16 %v298
      %v380 = vunpack.c.l.b16 %v299
      %v381 = vunpack.c.l.b16 %v300
      %v382 = vunpack.c.l.b16 %v301
      %v383 = vpack.c.b16 %v376, %v375
      %v384 = vpack.c.b16 %v378, %v377
      %v385 = vpack.c.b16 %v380, %v379
      %v386 = vpack.c.b16 %v382, %v381
      %v391 = vsel %vm349, %v293, 0
      %393 = vmatpush.bf16.msra.mxu0 0
      %394 = vmatpush.bf16.msra.mxu0 0
      %395 = vmatpush.bf16.msra.mxu0 0
      %396 = vmatpush.bf16.msra.mxu0 0
      %397 = vmatpush.bf16.msra.mxu0 %v386
      %398 = vmatpush.bf16.msra.mxu0 %v385
      %399 = vmatpush.bf16.msra.mxu0 %v384
      %400 = vmatpush.bf16.msra.mxu0 %v383
      %401 = vmatmul.bf16.gmra.mxu0 %v391
      %v402 = vpop.f32.mrf.mxu0
      %v403 = vadd.f32 %v363, %v402
      %v404 = vpop.f32.mrf.mxu0
      %v405 = vadd.f32 %v365, %v404
      %406 = vdwg.mxu0
      %s407 = scalar_lea.vmem %s1, 64
      %v408 = vld [vmem:[%s407] sm:$0xf]
      %v409 = vld [vmem:[%s407 + $0x4] sm:$0xf]
      %v410 = vld [vmem:[%s407 + $0x8] sm:$0xf]
      %v411 = vld [vmem:[%s407 + $0xc] sm:$0xf]
      %v412 = vld [vmem:[%s407 + $0x10] sm:$0xf]
      %v413 = vld [vmem:[%s407 + $0x14] sm:$0xf]
      %v414 = vld [vmem:[%s407 + $0x18] sm:$0xf]
      %v415 = vld [vmem:[%s407 + $0x1c] sm:$0xf]
      %vm418 = vcmask 1046528
      %v419 = vrot.slane %v293, 1
      %v420 = vrot.slane %v302, 1
      %v421 = vsel %vm418, %v419, %v420
      %v430 = vunpack.c.l.b16 %v408
      %v431 = vunpack.c.l.b16 %v409
      %v432 = vunpack.c.l.b16 %v410
      %v433 = vunpack.c.l.b16 %v411
      %v434 = vunpack.c.l.b16 %v412
      %v435 = vunpack.c.l.b16 %v413
      %v436 = vunpack.c.l.b16 %v414
      %v437 = vunpack.c.l.b16 %v415
      %v438 = vpack.c.b16 %v431, %v430
      %v439 = vpack.c.b16 %v433, %v432
      %v440 = vpack.c.b16 %v435, %v434
      %v441 = vpack.c.b16 %v437, %v436
      %v447 = vsel %vm349, %v421, 0
      %449 = vmatpush.bf16.msra.mxu0 0
      %450 = vmatpush.bf16.msra.mxu0 0
      %451 = vmatpush.bf16.msra.mxu0 0
      %452 = vmatpush.bf16.msra.mxu0 0
      %453 = vmatpush.bf16.msra.mxu0 %v441
      %454 = vmatpush.bf16.msra.mxu0 %v440
      %455 = vmatpush.bf16.msra.mxu0 %v439
      %456 = vmatpush.bf16.msra.mxu0 %v438
      %457 = vmatmul.bf16.gmra.mxu0 %v447
      %v458 = vpop.f32.mrf.mxu0
      %v459 = vadd.f32 0.0, %v458
      %v460 = vpop.f32.mrf.mxu0
      %v461 = vadd.f32 0.0, %v460
      %462 = vdwg.mxu0
      %v463 = vadd.f32 %v403, %v459
      %v464 = vadd.f32 %v405, %v461
      %v465 = vld [vmem:[%s3] sm:$0x1]
      %v467 = vperm.slane %v465, 0
      %v469 = vmul.f32 %v463, %v467
      %v470 = vmul.f32 %v464, %v467
      %v471 = vld [vmem:[%s4] sm:$0x1]
      %v473 = vperm.slane %v471, 0
      %v475 = vadd.f32 %v469, %v473
      %v476 = vadd.f32 %v470, %v473
      %v477 = vmax.f32 %v475, 0.0
      %v478 = vmax.f32 %v476, 0.0
      %v481 = vrot.slane %v477, 7
      %v482 = vrot.slane %v478, 7
      %v483 = vsel %vm284, %v481, %v482
      %v487 = vsel %vm284, 0.0, %v481
      %v488 = vsel %vm284, %v482, 0.0
      %v489 = vpack.c.bf16 %v483, %v487
      %v490 = vld [vmem:[%s2] sm:$0xf]
      %v491 = vld [vmem:[%s2 + $0x4] sm:$0xf]
      %v492 = vld [vmem:[%s2 + $0x8] sm:$0xf]
      %v493 = vld [vmem:[%s2 + $0xc] sm:$0xf]
      %v494 = vld [vmem:[%s2 + $0x10] sm:$0xf]
      %v495 = vld [vmem:[%s2 + $0x14] sm:$0xf]
      %v496 = vld [vmem:[%s2 + $0x18] sm:$0xf]
      %v497 = vld [vmem:[%s2 + $0x1c] sm:$0xf]
      %v498 = vld [vmem:[%s2 + $0x20] sm:$0xf]
      %v499 = vld [vmem:[%s2 + $0x24] sm:$0xf]
      %v500 = vld [vmem:[%s2 + $0x28] sm:$0xf]
      %v501 = vld [vmem:[%s2 + $0x2c] sm:$0xf]
      %v502 = vld [vmem:[%s2 + $0x30] sm:$0xf]
      %v503 = vld [vmem:[%s2 + $0x34] sm:$0xf]
      %v504 = vld [vmem:[%s2 + $0x38] sm:$0xf]
      %v505 = vld [vmem:[%s2 + $0x3c] sm:$0xf]
      %v506 = vpack.c.bf16 %v488, %v488
      %s507 = scalar_lea.vmem %s2, 64
      %v508 = vld [vmem:[%s507] sm:$0xf]
      %v509 = vld [vmem:[%s507 + $0x4] sm:$0xf]
      %v510 = vld [vmem:[%s507 + $0x8] sm:$0xf]
      %v511 = vld [vmem:[%s507 + $0xc] sm:$0xf]
      %v512 = vld [vmem:[%s507 + $0x10] sm:$0xf]
      %v513 = vld [vmem:[%s507 + $0x14] sm:$0xf]
      %v514 = vld [vmem:[%s507 + $0x18] sm:$0xf]
      %v515 = vld [vmem:[%s507 + $0x1c] sm:$0xf]
      %v516 = vld [vmem:[%s507 + $0x20] sm:$0xf]
      %v517 = vld [vmem:[%s507 + $0x24] sm:$0xf]
      %v518 = vld [vmem:[%s507 + $0x28] sm:$0xf]
      %v519 = vld [vmem:[%s507 + $0x2c] sm:$0xf]
      %v520 = vld [vmem:[%s507 + $0x30] sm:$0xf]
      %v521 = vld [vmem:[%s507 + $0x34] sm:$0xf]
      %v522 = vld [vmem:[%s507 + $0x38] sm:$0xf]
      %v523 = vld [vmem:[%s507 + $0x3c] sm:$0xf]
      %v525 = vshrl.u32 %v489, 16
      %v527 = vshll.u32 %v489, 16
      %v529 = vrot.slane %v527, 1
      %v530 = vor.u32 %v525, %v529
      %v532 = vshll.u32 %v506, 16
      %v534 = vrot.slane %v532, 1
      %v535 = vsel %vm312, %v530, %v534
      %v553 = vunpack.c.l.b16 %v508
      %v554 = vunpack.c.l.b16 %v509
      %v555 = vunpack.c.l.b16 %v510
      %v556 = vunpack.c.l.b16 %v511
      %v557 = vunpack.c.l.b16 %v512
      %v558 = vunpack.c.l.b16 %v513
      %v559 = vunpack.c.l.b16 %v514
      %v560 = vunpack.c.l.b16 %v515
      %v561 = vunpack.c.l.b16 %v516
      %v562 = vunpack.c.l.b16 %v517
      %v563 = vunpack.c.l.b16 %v518
      %v564 = vunpack.c.l.b16 %v519
      %v565 = vunpack.c.l.b16 %v520
      %v566 = vunpack.c.l.b16 %v521
      %v567 = vunpack.c.l.b16 %v522
      %v568 = vunpack.c.l.b16 %v523
      %v569 = vpack.c.b16 %v554, %v553
      %v570 = vpack.c.b16 %v556, %v555
      %v571 = vpack.c.b16 %v558, %v557
      %v572 = vpack.c.b16 %v560, %v559
      %v573 = vpack.c.b16 %v562, %v561
      %v574 = vpack.c.b16 %v564, %v563
      %v575 = vpack.c.b16 %v566, %v565
      %v576 = vpack.c.b16 %v568, %v567
      %585 = vmatpush.bf16.msra.mxu0 %v576
      %586 = vmatpush.bf16.msra.mxu0 %v575
      %587 = vmatpush.bf16.msra.mxu0 %v574
      %588 = vmatpush.bf16.msra.mxu0 %v573
      %589 = vmatpush.bf16.msra.mxu0 %v572
      %590 = vmatpush.bf16.msra.mxu0 %v571
      %591 = vmatpush.bf16.msra.mxu0 %v570
      %592 = vmatpush.bf16.msra.mxu0 %v569
      %593 = vmatmul.bf16.gmra.mxu0 %v535
      %v594 = vpop.f32.mrf.mxu0
      %v595 = vadd.f32 0.0, %v594
      %v596 = vpop.f32.mrf.mxu0
      %v597 = vadd.f32 0.0, %v596
      %598 = vdwg.mxu0
      %v615 = vunpack.c.l.b16 %v490
      %v616 = vunpack.c.l.b16 %v491
      %v617 = vunpack.c.l.b16 %v492
      %v618 = vunpack.c.l.b16 %v493
      %v619 = vunpack.c.l.b16 %v494
      %v620 = vunpack.c.l.b16 %v495
      %v621 = vunpack.c.l.b16 %v496
      %v622 = vunpack.c.l.b16 %v497
      %v623 = vunpack.c.l.b16 %v498
      %v624 = vunpack.c.l.b16 %v499
      %v625 = vunpack.c.l.b16 %v500
      %v626 = vunpack.c.l.b16 %v501
      %v627 = vunpack.c.l.b16 %v502
      %v628 = vunpack.c.l.b16 %v503
      %v629 = vunpack.c.l.b16 %v504
      %v630 = vunpack.c.l.b16 %v505
      %v631 = vpack.c.b16 %v616, %v615
      %v632 = vpack.c.b16 %v618, %v617
      %v633 = vpack.c.b16 %v620, %v619
      %v634 = vpack.c.b16 %v622, %v621
      %v635 = vpack.c.b16 %v624, %v623
      %v636 = vpack.c.b16 %v626, %v625
      %v637 = vpack.c.b16 %v628, %v627
      %v638 = vpack.c.b16 %v630, %v629
      %647 = vmatpush.bf16.msra.mxu0 %v638
      %648 = vmatpush.bf16.msra.mxu0 %v637
      %649 = vmatpush.bf16.msra.mxu0 %v636
      %650 = vmatpush.bf16.msra.mxu0 %v635
      %651 = vmatpush.bf16.msra.mxu0 %v634
      %652 = vmatpush.bf16.msra.mxu0 %v633
      %653 = vmatpush.bf16.msra.mxu0 %v632
      %654 = vmatpush.bf16.msra.mxu0 %v631
      %655 = vmatmul.bf16.gmra.mxu0 %v489
      %v656 = vpop.f32.mrf.mxu0
      %v657 = vadd.f32 %v595, %v656
      %v658 = vpop.f32.mrf.mxu0
      %v659 = vadd.f32 %v597, %v658
      %660 = vdwg.mxu0
      %s661 = scalar_lea.vmem %s2, 128
      %v662 = vld [vmem:[%s661] sm:$0xf]
      %v663 = vld [vmem:[%s661 + $0x4] sm:$0xf]
      %v664 = vld [vmem:[%s661 + $0x8] sm:$0xf]
      %v665 = vld [vmem:[%s661 + $0xc] sm:$0xf]
      %v666 = vld [vmem:[%s661 + $0x10] sm:$0xf]
      %v667 = vld [vmem:[%s661 + $0x14] sm:$0xf]
      %v668 = vld [vmem:[%s661 + $0x18] sm:$0xf]
      %v669 = vld [vmem:[%s661 + $0x1c] sm:$0xf]
      %v670 = vld [vmem:[%s661 + $0x20] sm:$0xf]
      %v671 = vld [vmem:[%s661 + $0x24] sm:$0xf]
      %v672 = vld [vmem:[%s661 + $0x28] sm:$0xf]
      %v673 = vld [vmem:[%s661 + $0x2c] sm:$0xf]
      %v674 = vld [vmem:[%s661 + $0x30] sm:$0xf]
      %v675 = vld [vmem:[%s661 + $0x34] sm:$0xf]
      %v676 = vld [vmem:[%s661 + $0x38] sm:$0xf]
      %v677 = vld [vmem:[%s661 + $0x3c] sm:$0xf]
      %v680 = vrot.slane %v489, 1
      %v681 = vrot.slane %v506, 1
      %v682 = vsel %vm418, %v680, %v681
      %v700 = vunpack.c.l.b16 %v662
      %v701 = vunpack.c.l.b16 %v663
      %v702 = vunpack.c.l.b16 %v664
      %v703 = vunpack.c.l.b16 %v665
      %v704 = vunpack.c.l.b16 %v666
      %v705 = vunpack.c.l.b16 %v667
      %v706 = vunpack.c.l.b16 %v668
      %v707 = vunpack.c.l.b16 %v669
      %v708 = vunpack.c.l.b16 %v670
      %v709 = vunpack.c.l.b16 %v671
      %v710 = vunpack.c.l.b16 %v672
      %v711 = vunpack.c.l.b16 %v673
      %v712 = vunpack.c.l.b16 %v674
      %v713 = vunpack.c.l.b16 %v675
      %v714 = vunpack.c.l.b16 %v676
      %v715 = vunpack.c.l.b16 %v677
      %v716 = vpack.c.b16 %v701, %v700
      %v717 = vpack.c.b16 %v703, %v702
      %v718 = vpack.c.b16 %v705, %v704
      %v719 = vpack.c.b16 %v707, %v706
      %v720 = vpack.c.b16 %v709, %v708
      %v721 = vpack.c.b16 %v711, %v710
      %v722 = vpack.c.b16 %v713, %v712
      %v723 = vpack.c.b16 %v715, %v714
      %732 = vmatpush.bf16.msra.mxu0 %v723
      %733 = vmatpush.bf16.msra.mxu0 %v722
      %734 = vmatpush.bf16.msra.mxu0 %v721
      %735 = vmatpush.bf16.msra.mxu0 %v720
      %736 = vmatpush.bf16.msra.mxu0 %v719
      %737 = vmatpush.bf16.msra.mxu0 %v718
      %738 = vmatpush.bf16.msra.mxu0 %v717
      %739 = vmatpush.bf16.msra.mxu0 %v716
      %740 = vmatmul.bf16.gmra.mxu0 %v682
      %v741 = vpop.f32.mrf.mxu0
      %v742 = vadd.f32 0.0, %v741
      %v743 = vpop.f32.mrf.mxu0
      %v744 = vadd.f32 0.0, %v743
      %745 = vdwg.mxu0
      %v746 = vadd.f32 %v657, %v742
      %v747 = vadd.f32 %v659, %v744
      %v748 = vld [vmem:[%s5] sm:$0x1]
      %v750 = vperm.slane %v748, 0
      %v752 = vmul.f32 %v746, %v750
      %v753 = vmul.f32 %v747, %v750
      %v754 = vld [vmem:[%s6] sm:$0x1]
      %v756 = vperm.slane %v754, 0
      %v758 = vadd.f32 %v752, %v756
      %v759 = vadd.f32 %v753, %v756
      %v760 = vmax.f32 %v758, 0.0
      %v761 = vmax.f32 %v759, 0.0
      %762 = vst [vmem:[%s278] sm:$0xff] %v760
      %763 = vst [vmem:[%s278 + $0x8] sm:$0xff] %v761
      %p764 = scmp.lt.s32.totalorder %s18, 1
      %s765 = scalar_select %p764, %s18, 1
      %s766 = smul.addr %s765, 2
      %s767 = smul.addr %s766, 8
      %s768 = scalar_lea.vmem %s7, %s767
      // Predicated region
      $region49: #{double_conv.1} parent=47 // pred_check
        %p769 = pneg %p188
      $region50: #{double_conv.1} parent=47 // pred_check_branch
        %771 = sbr.rel (%p769) target = $region52
      $region51: #{double_conv.1} parent=47 // pred_region
        _
      $region52: #{double_conv.1} parent=47 // pred_fallthru
        _
    $region48: #{double_conv.1} parent=5 // pred_fallthru
      _
    %p772 = scmp.le.s32.totalorder 2, %s13
    // Predicated region
    $region53: #{double_conv.1} parent=5 // pred_check
      %p773 = pneg %p772
    $region54: #{double_conv.1} parent=5 // pred_check_branch
      %775 = sbr.rel (%p773) target = $region56
    $region55: #{double_conv.1} parent=5 // pred_region
      %s776 = ssub.s32 %s13, 2
      // Predicated region
      $region57: #{double_conv.1} parent=55 // pred_check
        %p777 = pneg %p194
      $region58: #{double_conv.1} parent=55 // pred_check_branch
        %779 = sbr.rel (%p777) target = $region60
      $region59: #{double_conv.1} parent=55 // pred_region
        %p780 = scmp.lt.s32.totalorder %s19, 1
        %s781 = scalar_select %p780, %s19, 1
        %s782 = smul.addr %s781, 2
        %s783 = smul.addr %s782, 8
        %s784 = scalar_lea.vmem %s7, %s783
      $region60: #{double_conv.1} parent=55 // pred_fallthru
        _
    $region56: #{double_conv.1} parent=5 // pred_fallthru
      _
  $region6: #{double_conv.1} parent=0 // loop_footer
    %s17 = sadd.s32 1, %s13
  $region7: #{double_conv.1} parent=0 // loop_footer_branch
    %12 = sbr.rel target = $region3
  $region8: #{double_conv.1} parent=0 // loop_exit
    _

</llo_original>
